<compile_context>
chip_gen: v7x
topology: tpu7x:2x2x1
jax: 0.10.0
libtpu: 0.0.40
codegen_flags: <defaults>
</compile_context>

<pallas_src>
import functools

import jax
import jax.numpy as jnp
from jax.experimental import pallas as pl
from jax.experimental.pallas import tpu as pltpu

BN_EPS = 1e-5
LANE = 128


def mlp_kernel(x_ref, w1_ref, gamma_ref, beta_ref, w2_ref, b2_ref, o_ref, acc_ref):
    j = pl.program_id(0)

    @pl.when(j == 0)
    def _init():
        # Start the accumulator at the (broadcast) second-layer bias.
        acc_ref[...] = jnp.broadcast_to(
            b2_ref[...].astype(jnp.float32), acc_ref.shape)

    # Linear 1 for this hidden tile: [B, D] @ [D, TH] -> f32 accumulate.
    # (b1 intentionally omitted: cancelled by training-mode BN mean subtraction.)
    h = jnp.dot(x_ref[...], w1_ref[...], preferred_element_type=jnp.float32)

    # BatchNorm1d (training mode) over the full batch, fused to scale/shift.
    mean = jnp.mean(h, axis=0, keepdims=True)
    var = jnp.maximum(
        jnp.mean(h * h, axis=0, keepdims=True) - mean * mean, 0.0)  # biased var
    scale = gamma_ref[...].astype(jnp.float32) * jax.lax.rsqrt(var + BN_EPS)
    shift = beta_ref[...].astype(jnp.float32) - mean * scale

    # Fused normalize + affine, then ReLU (lane-dense [B, TH] vregs).
    h_act = jnp.maximum(h * scale + shift, 0.0)

    # Linear 2 partial product for this hidden tile, accumulated in f32.
    acc_ref[...] += jnp.dot(
        h_act.astype(w2_ref.dtype), w2_ref[...],
        preferred_element_type=jnp.float32)

    @pl.when(j == pl.num_programs(0) - 1)
    def _finalize():
        o_ref[...] = acc_ref[...].astype(o_ref.dtype)


def _pad_axis(a, axis, multiple):
    size = a.shape[axis]
    pad = (-size) % multiple
    if pad == 0:
        return a
    widths = [(0, 0)] * a.ndim
    widths[axis] = (0, pad)
    return jnp.pad(a, widths)


@functools.partial(jax.jit, static_argnames=("tile_h",))
def mlp_forward(x, w1, b1, gamma, beta, w2, b2, *, tile_h=128):
    """Forward pass of MLP(dim, projection_size, hidden_size) in train mode.

    b1 is accepted for parity with the PyTorch module but is mathematically a
    no-op in front of a training-mode BatchNorm, so it is never sent to the
    kernel.
    """
    del b1  # cancelled by BN mean subtraction
    assert tile_h % LANE == 0
    B, D = x.shape
    H = w1.shape[1]
    P = w2.shape[1]

    # Zero-pad feature dims to lane-dense multiples of 128.
    w1_p = _pad_axis(w1, 1, tile_h)
    gamma_p = _pad_axis(gamma.reshape(1, H), 1, tile_h)   # pad gamma with 0
    beta_p = _pad_axis(beta.reshape(1, H), 1, tile_h)
    w2_p = _pad_axis(_pad_axis(w2, 0, tile_h), 1, LANE)
    b2_p = _pad_axis(b2.reshape(1, P), 1, LANE)

    H_pad = w1_p.shape[1]
    P_pad = w2_p.shape[1]
    n_h = H_pad // tile_h

    out_p = pl.pallas_call(
        mlp_kernel,
        out_shape=jax.ShapeDtypeStruct((B, P_pad), x.dtype),
        grid_spec=pltpu.PrefetchScalarGridSpec(
            num_scalar_prefetch=0,
            grid=(n_h,),
            in_specs=[
                pl.BlockSpec((B, D), lambda j: (0, 0)),           # x (resident)
                pl.BlockSpec((D, tile_h), lambda j: (0, j)),      # w1 tile
                pl.BlockSpec((1, tile_h), lambda j: (0, j)),      # gamma tile
                pl.BlockSpec((1, tile_h), lambda j: (0, j)),      # beta tile
                pl.BlockSpec((tile_h, P_pad), lambda j: (j, 0)),  # w2 tile
                pl.BlockSpec((1, P_pad), lambda j: (0, 0)),       # b2 (resident)
            ],
            out_specs=pl.BlockSpec((B, P_pad), lambda j: (0, 0)),
            scratch_shapes=[pltpu.VMEM((B, P_pad), jnp.float32)],
        ),
        compiler_params=pltpu.CompilerParams(
            dimension_semantics=("arbitrary",)),  # hidden axis is a reduction
    )(x, w1_p, gamma_p, beta_p, w2_p, b2_p)

    return out_p[:, :P]


def init_params(key, dim, projection_size, hidden_size):
    """Deterministic PyTorch-style (uniform Kaiming-ish) parameter init."""
    k1, k2, k3, k4 = jax.random.split(key, 4)
    bound1 = 1.0 / jnp.sqrt(dim)
    bound2 = 1.0 / jnp.sqrt(hidden_size)
    # Stored pre-transposed: [in, out]
    w1 = jax.random.uniform(k1, (dim, hidden_size), jnp.float32, -bound1, bound1)
    b1 = jax.random.uniform(k2, (1, hidden_size), jnp.float32, -bound1, bound1)
    w2 = jax.random.uniform(k3, (hidden_size, projection_size), jnp.float32,
                            -bound2, bound2)
    b2 = jax.random.uniform(k4, (1, projection_size), jnp.float32, -bound2, bound2)
    # BatchNorm affine params: gamma=1, beta=0 (PyTorch defaults)
    gamma = jnp.ones((1, hidden_size), jnp.float32)
    beta = jnp.zeros((1, hidden_size), jnp.float32)
    return w1, b1, gamma, beta, w2, b2


def reference_mlp(x, w1, b1, gamma, beta, w2, b2):
    """Pure-JAX reference matching the PyTorch module (train-mode BN), WITH b1."""
    h = x @ w1 + b1
    mean = jnp.mean(h, axis=0, keepdims=True)
    var = jnp.mean((h - mean) ** 2, axis=0, keepdims=True)
    h = (h - mean) / jnp.sqrt(var + BN_EPS) * gamma + beta
    h = jnp.maximum(h, 0.0)
    return h @ w2 + b2


if __name__ == "__main__":
    # Small shapes consistent with MLP(dim, projection_size, hidden_size)
    B, dim, hidden_size, projection_size = 8, 32, 64, 32

    key = jax.random.PRNGKey(0)
    kx, kp = jax.random.split(key)
    x = jax.random.normal(kx, (B, dim), jnp.float32)
    params = init_params(kp, dim, projection_size, hidden_size)

    out = mlp_forward(x, *params)
    out = jax.block_until_ready(out)

    ref = reference_mlp(x, *params)
    assert out.shape == (B, projection_size)
    assert jnp.allclose(out, ref, atol=2e-4, rtol=2e-4), (
        float(jnp.max(jnp.abs(out - ref))))

    print("KERNEL_OK")
</pallas_src>

<mosaic_0001>
module attributes {stable_mosaic.version = 11 : i64} {
  func.func @mlp_kernel(%arg0: i32, %arg1: memref<8x32xf32, #tpu.memory_space<vmem>>, %arg2: memref<32x128xf32, #tpu.memory_space<vmem>>, %arg3: memref<1x128xf32, #tpu.memory_space<vmem>>, %arg4: memref<1x128xf32, #tpu.memory_space<vmem>>, %arg5: memref<128x128xf32, #tpu.memory_space<vmem>>, %arg6: memref<1x128xf32, #tpu.memory_space<vmem>>, %arg7: memref<8x128xf32, #tpu.memory_space<vmem>>, %arg8: memref<8x128xf32, #tpu.memory_space<vmem>>) attributes {dimension_semantics = [#tpu.dimension_semantics<arbitrary>], iteration_bounds = array<i64: 1>, scalar_prefetch = 0 : i64, scratch_operands = 1 : i64, tpu.core_type = #tpu.core_type<tc>, window_params = [{pipeline_mode = #tpu.pipeline_mode<synchronous>, transform_indices = @transform_0, window_bounds = array<i64: 8, 32>}, {transform_indices = @transform_1, window_bounds = array<i64: 32, 128>}, {transform_indices = @transform_2, window_bounds = array<i64: 1, 128>}, {transform_indices = @transform_3, window_bounds = array<i64: 1, 128>}, {transform_indices = @transform_4, window_bounds = array<i64: 128, 128>}, {pipeline_mode = #tpu.pipeline_mode<synchronous>, transform_indices = @transform_5, window_bounds = array<i64: 1, 128>}, {pipeline_mode = #tpu.pipeline_mode<synchronous>, transform_indices = @transform_6, window_bounds = array<i64: 8, 128>}]} {
    %c0_i32 = arith.constant 0 : i32
    %0 = arith.cmpi eq, %arg0, %c0_i32 : i32
    %1 = arith.extui %0 : i1 to i32
    %c0_i32_0 = arith.constant 0 : i32
    %2 = arith.cmpi ne, %1, %c0_i32_0 : i32
    scf.if %2 {
      %c0_24 = arith.constant 0 : index
      %c0_25 = arith.constant 0 : index
      %41 = vector.load %arg6[%c0_24, %c0_25] : memref<1x128xf32, #tpu.memory_space<vmem>>, vector<1x128xf32>
      %42 = vector.shape_cast %41 : vector<1x128xf32> to vector<1x128xf32>
      %43 = vector.broadcast %42 : vector<1x128xf32> to vector<8x128xf32>
      %c0_26 = arith.constant 0 : index
      %c0_27 = arith.constant 0 : index
      %44 = vector.load %arg8[%c0_26, %c0_27] : memref<8x128xf32, #tpu.memory_space<vmem>>, vector<8x128xf32>
      tpu.vector_store %arg8[%c0_26, %c0_27], %43 {strides = array<i32>} : memref<8x128xf32, #tpu.memory_space<vmem>>, vector<8x128xf32>,
    } else {
    }
    %c0 = arith.constant 0 : index
    %c0_1 = arith.constant 0 : index
    %3 = vector.load %arg1[%c0, %c0_1] : memref<8x32xf32, #tpu.memory_space<vmem>>, vector<8x32xf32>
    %c0_2 = arith.constant 0 : index
    %c0_3 = arith.constant 0 : index
    %4 = vector.load %arg2[%c0_2, %c0_3] : memref<32x128xf32, #tpu.memory_space<vmem>>, vector<32x128xf32>
    %cst = arith.constant dense<0.000000e+00> : vector<8x128xf32>
    %5 = tpu.matmul %3, %4, %cst {dimension_numbers = #tpu.dot_dimension_numbers<[1], [0], [0], [1], [0, 0, 1, 1], [], []>} : vector<8x32xf32>, vector<32x128xf32>, vector<8x128xf32> -> vector<8x128xf32>
    %cst_4 = arith.constant dense<0.000000e+00> : vector<128xf32>
    %6 = vector.multi_reduction <add>, %5, %cst_4 [0] : vector<8x128xf32> to vector<128xf32>
    %7 = vector.shape_cast %6 : vector<128xf32> to vector<1x128xf32>
    %cst_5 = arith.constant 8.000000e+00 : f32
    %8 = vector.broadcast %cst_5 : f32 to vector<1x128xf32>
    %9 = arith.divf %7, %8 : vector<1x128xf32>
    %10 = arith.mulf %5, %5 : vector<8x128xf32>
    %cst_6 = arith.constant dense<0.000000e+00> : vector<128xf32>
    %11 = vector.multi_reduction <add>, %10, %cst_6 [0] : vector<8x128xf32> to vector<128xf32>
    %12 = vector.shape_cast %11 : vector<128xf32> to vector<1x128xf32>
    %cst_7 = arith.constant 8.000000e+00 : f32
    %13 = vector.broadcast %cst_7 : f32 to vector<1x128xf32>
    %14 = arith.divf %12, %13 : vector<1x128xf32>
    %15 = arith.mulf %9, %9 : vector<1x128xf32>
    %16 = arith.subf %14, %15 : vector<1x128xf32>
    %cst_8 = arith.constant 0.000000e+00 : f32
    %17 = vector.broadcast %cst_8 : f32 to vector<1x128xf32>
    %18 = arith.maximumf %16, %17 : vector<1x128xf32>
    %c0_9 = arith.constant 0 : index
    %c0_10 = arith.constant 0 : index
    %19 = vector.load %arg3[%c0_9, %c0_10] : memref<1x128xf32, #tpu.memory_space<vmem>>, vector<1x128xf32>
    %cst_11 = arith.constant 9.99999974E-6 : f32
    %20 = vector.broadcast %cst_11 : f32 to vector<1x128xf32>
    %21 = arith.addf %18, %20 : vector<1x128xf32>
    %22 = math.rsqrt %21 : vector<1x128xf32>
    %23 = arith.mulf %19, %22 : vector<1x128xf32>
    %c0_12 = arith.constant 0 : index
    %c0_13 = arith.constant 0 : index
    %24 = vector.load %arg4[%c0_12, %c0_13] : memref<1x128xf32, #tpu.memory_space<vmem>>, vector<1x128xf32>
    %25 = arith.mulf %9, %23 : vector<1x128xf32>
    %26 = arith.subf %24, %25 : vector<1x128xf32>
    %27 = vector.broadcast %23 : vector<1x128xf32> to vector<8x128xf32>
    %28 = arith.mulf %5, %27 : vector<8x128xf32>
    %29 = vector.broadcast %26 : vector<1x128xf32> to vector<8x128xf32>
    %30 = arith.addf %28, %29 : vector<8x128xf32>
    %cst_14 = arith.constant 0.000000e+00 : f32
    %31 = vector.broadcast %cst_14 : f32 to vector<8x128xf32>
    %32 = arith.maximumf %30, %31 : vector<8x128xf32>
    %c0_15 = arith.constant 0 : index
    %c0_16 = arith.constant 0 : index
    %33 = vector.load %arg8[%c0_15, %c0_16] : memref<8x128xf32, #tpu.memory_space<vmem>>, vector<8x128xf32>
    %c0_17 = arith.constant 0 : index
    %c0_18 = arith.constant 0 : index
    %34 = vector.load %arg5[%c0_17, %c0_18] : memref<128x128xf32, #tpu.memory_space<vmem>>, vector<128x128xf32>
    %cst_19 = arith.constant dense<0.000000e+00> : vector<8x128xf32>
    %35 = tpu.matmul %32, %34, %cst_19 {dimension_numbers = #tpu.dot_dimension_numbers<[1], [0], [0], [1], [0, 0, 1, 1], [], []>} : vector<8x128xf32>, vector<128x128xf32>, vector<8x128xf32> -> vector<8x128xf32>
    %36 = arith.addf %33, %35 : vector<8x128xf32>
    %c0_20 = arith.constant 0 : index
    %c0_21 = arith.constant 0 : index
    %37 = vector.load %arg8[%c0_20, %c0_21] : memref<8x128xf32, #tpu.memory_space<vmem>>, vector<8x128xf32>
    tpu.vector_store %arg8[%c0_20, %c0_21], %36 {strides = array<i32>} : memref<8x128xf32, #tpu.memory_space<vmem>>, vector<8x128xf32>,
    %c0_i32_22 = arith.constant 0 : i32
    %38 = arith.cmpi eq, %arg0, %c0_i32_22 : i32
    %39 = arith.extui %38 : i1 to i32
    %c0_i32_23 = arith.constant 0 : i32
    %40 = arith.cmpi ne, %39, %c0_i32_23 : i32
    scf.if %40 {
      %c0_24 = arith.constant 0 : index
      %c0_25 = arith.constant 0 : index
      %41 = vector.load %arg8[%c0_24, %c0_25] : memref<8x128xf32, #tpu.memory_space<vmem>>, vector<8x128xf32>
      %c0_26 = arith.constant 0 : index
      %c0_27 = arith.constant 0 : index
      %42 = vector.load %arg7[%c0_26, %c0_27] : memref<8x128xf32, #tpu.memory_space<vmem>>, vector<8x128xf32>
      tpu.vector_store %arg7[%c0_26, %c0_27], %41 {strides = array<i32>} : memref<8x128xf32, #tpu.memory_space<vmem>>, vector<8x128xf32>,
    } else {
    }
    return
  }
  func.func @transform_0(%arg0: i32) -> (i32, i32) {
    %c0_i32 = arith.constant 0 : i32
    %c0_i32_0 = arith.constant 0 : i32
    %c0_i32_1 = arith.constant 0 : i32
    return %c0_i32, %c0_i32_0 : i32, i32
  }
  func.func @transform_1(%arg0: i32) -> (i32, i32) {
    %c0_i32 = arith.constant 0 : i32
    %c0_i32_0 = arith.constant 0 : i32
    return %c0_i32, %arg0 : i32, i32
  }
  func.func @transform_2(%arg0: i32) -> (i32, i32) {
    %c0_i32 = arith.constant 0 : i32
    %c0_i32_0 = arith.constant 0 : i32
    return %c0_i32, %arg0 : i32, i32
  }
  func.func @transform_3(%arg0: i32) -> (i32, i32) {
    %c0_i32 = arith.constant 0 : i32
    %c0_i32_0 = arith.constant 0 : i32
    return %c0_i32, %arg0 : i32, i32
  }
  func.func @transform_4(%arg0: i32) -> (i32, i32) {
    %c0_i32 = arith.constant 0 : i32
    %c0_i32_0 = arith.constant 0 : i32
    return %arg0, %c0_i32 : i32, i32
  }
  func.func @transform_5(%arg0: i32) -> (i32, i32) {
    %c0_i32 = arith.constant 0 : i32
    %c0_i32_0 = arith.constant 0 : i32
    %c0_i32_1 = arith.constant 0 : i32
    return %c0_i32, %c0_i32_0 : i32, i32
  }
  func.func @transform_6(%arg0: i32) -> (i32, i32) {
    %c0_i32 = arith.constant 0 : i32
    %c0_i32_0 = arith.constant 0 : i32
    %c0_i32_1 = arith.constant 0 : i32
    return %c0_i32, %c0_i32_0 : i32, i32
  }
}

</mosaic_0001>

<llo_original>
// kernel: mlp_forward.1
$region0: #{mlp_forward.1}
  #allocation0 [shape = 'u32[]', space=smem, size = 0x4, offset = 0x4, fixed_abs, tag = 'smem constant byte address 0x4 - core index']
  #allocation1 [shape = 'u32[144,128]{1,0:T(1,128)}', space=vmem, size = 0x12000, scoped, tag = 'internal scratch']
  #allocation2 [shape = 'f32[8,128]{1,0:T(8,128)}', space=vmem, size = 0x1000, scoped, tag = 'scratch operand']
  %s0 = inlined_call_operand.vmem [shape: f32[8,32], index: 0, kind: input, shape index: {}]
  %s1 = inlined_call_operand.vmem [shape: f32[32,128], index: 1, kind: input, shape index: {}]
  %s2 = inlined_call_operand.vmem [shape: f32[1,128], index: 2, kind: input, shape index: {}]
  %s3 = inlined_call_operand.vmem [shape: f32[1,128], index: 3, kind: input, shape index: {}]
  %s4 = inlined_call_operand.vmem [shape: f32[128,128], index: 4, kind: input, shape index: {}]
  %s5 = inlined_call_operand.vmem [shape: f32[1,128], index: 5, kind: input, shape index: {}]
  %s6 = inlined_call_operand.hbm [shape: f32[8,128], index: 6, kind: output, shape index: {}]
  %s7 = sld [smem:[#allocation0]]
  $region42: #{mlp_forward.1} parent=0
    _
  %s9 = ssub.s32 1, %s7
  %s10 = scalar_select 0, %s9, %s7
  $region1: #{mlp_forward.1} parent=0
    #allocation3 [shape = 'u8[4096]{0}', space=vmem, size = 0x1000, scoped, tag = 'output window, operand 0, single buffered']
    #allocation4 [shape = 's32[1]{0}', space=sflag, size = 0x4, scoped, tag = 'scoped memory for mlp_forward.1']
    %11 = vsyncpa [#allocation4], 0
    // Predicated region
    $region2: #{mlp_forward.1} parent=1 // pred_check
      _
    $region3: #{mlp_forward.1} parent=1 // pred_check_branch
      %13 = sbr.rel (0) target = $region5
    $region4: #{mlp_forward.1} parent=1 // pred_region
      _
    $region5: #{mlp_forward.1} parent=1 // pred_fallthru
      _
    // Predicated region
    $region6: #{mlp_forward.1} parent=1 // pred_check
      _
    $region7: #{mlp_forward.1} parent=1 // pred_check_branch
      %15 = sbr.rel (0) target = $region9
    $region8: #{mlp_forward.1} parent=1 // pred_region
      _
    $region9: #{mlp_forward.1} parent=1 // pred_fallthru
      _
    // Predicated region
    $region10: #{mlp_forward.1} parent=1 // pred_check
      _
    $region11: #{mlp_forward.1} parent=1 // pred_check_branch
      %17 = sbr.rel (0) target = $region13
    $region12: #{mlp_forward.1} parent=1 // pred_region
      _
    $region13: #{mlp_forward.1} parent=1 // pred_fallthru
      _
    // Predicated region
    $region14: #{mlp_forward.1} parent=1 // pred_check
      _
    $region15: #{mlp_forward.1} parent=1 // pred_check_branch
      %19 = sbr.rel (0) target = $region17
    $region16: #{mlp_forward.1} parent=1 // pred_region
      _
    $region17: #{mlp_forward.1} parent=1 // pred_fallthru
      _
    // Predicated region
    $region18: #{mlp_forward.1} parent=1 // pred_check
      _
    $region19: #{mlp_forward.1} parent=1 // pred_check_branch
      %21 = sbr.rel (0) target = $region21
    $region20: #{mlp_forward.1} parent=1 // pred_region
      _
    $region21: #{mlp_forward.1} parent=1 // pred_fallthru
      _
    // Predicated region
    $region22: #{mlp_forward.1} parent=1 // pred_check
      _
    $region23: #{mlp_forward.1} parent=1 // pred_check_branch
      %23 = sbr.rel (0) target = $region25
    $region24: #{mlp_forward.1} parent=1 // pred_region
      _
    $region25: #{mlp_forward.1} parent=1 // pred_fallthru
      _
    %p24 = scmp.eq.s32.totalorder 0, 0
    // Predicated region
    $region26: #{mlp_forward.1} parent=1 // pred_check
      %p25 = pneg %p24
    $region27: #{mlp_forward.1} parent=1 // pred_check_branch
      %27 = sbr.rel (%p25) target = $region29
    $region28: #{mlp_forward.1} parent=1 // pred_region
      %v28 = vld [vmem:[%s5] sm:$0x1]
      %v30 = vlaneseq
      %v31 = vshrl.u32 %v30, 7
      %v32 = vsub.s32 0, %v31
      %v33 = vrot.slane %v28, %v32
      %35 = vst [vmem:[#allocation2] sm:$0xff] %v33
    $region29: #{mlp_forward.1} parent=1 // pred_fallthru
      _
    %v36 = vld [vmem:[%s0] sm:$0xff]
    %v37 = vld [vmem:[%s1] sm:$0xff]
    %v38 = vld [vmem:[%s1 + $0x8] sm:$0xff]
    %v39 = vld [vmem:[%s1 + $0x10] sm:$0xff]
    %v40 = vld [vmem:[%s1 + $0x18] sm:$0xff]
    %vm41 = vcmask 261120
    %v43 = vsel %vm41, %v36, 0
    %45 = vmatprep.subr.mxu0 0.0
    %46 = vmatpush1.msra.mxu0 %v37
    %47 = vmatprep.subr.mxu0 0.0
    %48 = vmatpush1.msra.mxu0 %v38
    %49 = vmatprep.subr.mxu0 0.0
    %50 = vmatpush1.msra.mxu0 %v39
    %51 = vmatprep.subr.mxu0 0.0
    %52 = vmatpush1.msra.mxu0 %v40
    %53 = vmatprep.subr.mxu0 0.0
    %54 = vmatpush1.msra.mxu0 0.0
    %55 = vmatprep.subr.mxu0 0.0
    %56 = vmatpush1.msra.mxu0 0.0
    %57 = vmatprep.subr.mxu0 0.0
    %58 = vmatpush1.msra.mxu0 0.0
    %59 = vmatprep.subr.mxu0 0.0
    %60 = vmatpush1.msra.mxu0 0.0
    %61 = vmatprep.subr.mxu0 0.0
    %62 = vmatpush1.msra.mxu0 0.0
    %63 = vmatprep.subr.mxu0 0.0
    %64 = vmatpush1.msra.mxu0 0.0
    %65 = vmatprep.subr.mxu0 0.0
    %66 = vmatpush1.msra.mxu0 0.0
    %67 = vmatprep.subr.mxu0 0.0
    %68 = vmatpush1.msra.mxu0 0.0
    %69 = vmatprep.subr.mxu0 0.0
    %70 = vmatpush1.msra.mxu0 0.0
    %71 = vmatprep.subr.mxu0 0.0
    %72 = vmatpush1.msra.mxu0 0.0
    %73 = vmatprep.subr.mxu0 0.0
    %74 = vmatpush1.msra.mxu0 0.0
    %75 = vmatprep.subr.mxu0 0.0
    %76 = vmatpush1.msra.mxu0 0.0
    %77 = vmatprep.subr.mxu0 0.0
    %78 = vmatpush1.msra.mxu0 0.0
    %79 = vmatprep.subr.mxu0 0.0
    %80 = vmatpush1.msra.mxu0 0.0
    %81 = vmatprep.subr.mxu0 0.0
    %82 = vmatpush1.msra.mxu0 0.0
    %83 = vmatprep.subr.mxu0 0.0
    %84 = vmatpush1.msra.mxu0 0.0
    %85 = vmatprep.subr.mxu0 0.0
    %86 = vmatpush1.msra.mxu0 0.0
    %87 = vmatprep.subr.mxu0 0.0
    %88 = vmatpush1.msra.mxu0 0.0
    %89 = vmatprep.subr.mxu0 0.0
    %90 = vmatpush1.msra.mxu0 0.0
    %91 = vmatprep.subr.mxu0 0.0
    %92 = vmatpush1.msra.mxu0 0.0
    %93 = vmatprep.subr.mxu0 0.0
    %94 = vmatpush1.msra.mxu0 0.0
    %95 = vmatprep.subr.mxu0 0.0
    %96 = vmatpush1.msra.mxu0 0.0
    %97 = vmatprep.subr.mxu0 0.0
    %98 = vmatpush1.msra.mxu0 0.0
    %99 = vmatprep.subr.mxu0 0.0
    %100 = vmatpush1.msra.mxu0 0.0
    %101 = vmatprep.subr.mxu0 0.0
    %102 = vmatpush1.msra.mxu0 0.0
    %103 = vmatprep.subr.mxu0 0.0
    %104 = vmatpush1.msra.mxu0 0.0
    %105 = vmatprep.subr.mxu0 0.0
    %106 = vmatpush1.msra.mxu0 0.0
    %107 = vmatprep.subr.mxu0 0.0
    %108 = vmatpush1.msra.mxu0 0.0
    %109 = vmatprep.mubr.f32.mxu0 0.0
    %110 = vmatmul.mubr.f32.gmra.mrb[0].mxu0 %v43
    %v111 = vpop.f32.mrb[0].mxu0
    %v112 = vadd.f32 0.0, %v111
    %v113 = vpop.f32.mrb[0].mxu0
    %114 = vdwg.mxu0
    %v115 = vrot.slane %v112, 4
    %v116 = vadd.f32 %v112, %v115
    %v117 = vrot.slane %v116, 2
    %v118 = vadd.f32 %v116, %v117
    %v119 = vrot.slane %v118, 1
    %v120 = vadd.f32 %v118, %v119
    %v121 = vrcp.pop 8.0
    %v122 = vmul.f32 %v120, %v121
    %v123 = vmul.f32 %v112, %v112
    %v124 = vrot.slane %v123, 4
    %v125 = vadd.f32 %v123, %v124
    %v126 = vrot.slane %v125, 2
    %v127 = vadd.f32 %v125, %v126
    %v128 = vrot.slane %v127, 1
    %v129 = vadd.f32 %v127, %v128
    %v130 = vmul.f32 %v129, %v121
    %v131 = vmul.f32 %v122, %v122
    %v132 = vsub.f32 %v130, %v131
    %v133 = vmax.f32 %v132, 0.0
    %v134 = vld [vmem:[%s2] sm:$0x1]
    %v135 = vadd.f32 %v133, 1e-05
    %v136 = vrsqrt.pop %v135
    %v137 = vmul.f32 %v134, %v136
    %v138 = vld [vmem:[%s3] sm:$0x1]
    %v139 = vmul.f32 %v122, %v137
    %v140 = vsub.f32 %v138, %v139
    %v142 = vlaneseq
    %v143 = vshrl.u32 %v142, 7
    %v144 = vsub.s32 0, %v143
    %v145 = vrot.slane %v137, %v144
    %v147 = vmul.f32 %v112, %v145
    %v149 = vlaneseq
    %v150 = vshrl.u32 %v149, 7
    %v151 = vsub.s32 0, %v150
    %v152 = vrot.slane %v140, %v151
    %v154 = vadd.f32 %v147, %v152
    %v155 = vmax.f32 %v154, 0.0
    %v156 = vld [vmem:[#allocation2] sm:$0xff]
    %v157 = vld [vmem:[%s4] sm:$0xff]
    %v158 = vld [vmem:[%s4 + $0x8] sm:$0xff]
    %v159 = vld [vmem:[%s4 + $0x10] sm:$0xff]
    %v160 = vld [vmem:[%s4 + $0x18] sm:$0xff]
    %v161 = vld [vmem:[%s4 + $0x20] sm:$0xff]
    %v162 = vld [vmem:[%s4 + $0x28] sm:$0xff]
    %v163 = vld [vmem:[%s4 + $0x30] sm:$0xff]
    %v164 = vld [vmem:[%s4 + $0x38] sm:$0xff]
    %v165 = vld [vmem:[%s4 + $0x40] sm:$0xff]
    %v166 = vld [vmem:[%s4 + $0x48] sm:$0xff]
    %v167 = vld [vmem:[%s4 + $0x50] sm:$0xff]
    %v168 = vld [vmem:[%s4 + $0x58] sm:$0xff]
    %v169 = vld [vmem:[%s4 + $0x60] sm:$0xff]
    %v170 = vld [vmem:[%s4 + $0x68] sm:$0xff]
    %v171 = vld [vmem:[%s4 + $0x70] sm:$0xff]
    %v172 = vld [vmem:[%s4 + $0x78] sm:$0xff]
    %173 = vmatprep.subr.mxu0 0.0
    %174 = vmatpush1.msra.mxu0 %v157
    %175 = vmatprep.subr.mxu0 0.0
    %176 = vmatpush1.msra.mxu0 %v158
    %177 = vmatprep.subr.mxu0 0.0
    %178 = vmatpush1.msra.mxu0 %v159
    %179 = vmatprep.subr.mxu0 0.0
    %180 = vmatpush1.msra.mxu0 %v160
    %181 = vmatprep.subr.mxu0 0.0
    %182 = vmatpush1.msra.mxu0 %v161
    %183 = vmatprep.subr.mxu0 0.0
    %184 = vmatpush1.msra.mxu0 %v162
    %185 = vmatprep.subr.mxu0 0.0
    %186 = vmatpush1.msra.mxu0 %v163
    %187 = vmatprep.subr.mxu0 0.0
    %188 = vmatpush1.msra.mxu0 %v164
    %189 = vmatprep.subr.mxu0 0.0
    %190 = vmatpush1.msra.mxu0 %v165
    %191 = vmatprep.subr.mxu0 0.0
    %192 = vmatpush1.msra.mxu0 %v166
    %193 = vmatprep.subr.mxu0 0.0
    %194 = vmatpush1.msra.mxu0 %v167
    %195 = vmatprep.subr.mxu0 0.0
    %196 = vmatpush1.msra.mxu0 %v168
    %197 = vmatprep.subr.mxu0 0.0
    %198 = vmatpush1.msra.mxu0 %v169
    %199 = vmatprep.subr.mxu0 0.0
    %200 = vmatpush1.msra.mxu0 %v170
    %201 = vmatprep.subr.mxu0 0.0
    %202 = vmatpush1.msra.mxu0 %v171
    %203 = vmatprep.subr.mxu0 0.0
    %204 = vmatpush1.msra.mxu0 %v172
    %205 = vmatprep.subr.mxu0 0.0
    %206 = vmatpush1.msra.mxu0 0.0
    %207 = vmatprep.subr.mxu0 0.0
    %208 = vmatpush1.msra.mxu0 0.0
    %209 = vmatprep.subr.mxu0 0.0
    %210 = vmatpush1.msra.mxu0 0.0
    %211 = vmatprep.subr.mxu0 0.0
    %212 = vmatpush1.msra.mxu0 0.0
    %213 = vmatprep.subr.mxu0 0.0
    %214 = vmatpush1.msra.mxu0 0.0
    %215 = vmatprep.subr.mxu0 0.0
    %216 = vmatpush1.msra.mxu0 0.0
    %217 = vmatprep.subr.mxu0 0.0
    %218 = vmatpush1.msra.mxu0 0.0
    %219 = vmatprep.subr.mxu0 0.0
    %220 = vmatpush1.msra.mxu0 0.0
    %221 = vmatprep.subr.mxu0 0.0
    %222 = vmatpush1.msra.mxu0 0.0
    %223 = vmatprep.subr.mxu0 0.0
    %224 = vmatpush1.msra.mxu0 0.0
    %225 = vmatprep.subr.mxu0 0.0
    %226 = vmatpush1.msra.mxu0 0.0
    %227 = vmatprep.subr.mxu0 0.0
    %228 = vmatpush1.msra.mxu0 0.0
    %229 = vmatprep.subr.mxu0 0.0
    %230 = vmatpush1.msra.mxu0 0.0
    %231 = vmatprep.subr.mxu0 0.0
    %232 = vmatpush1.msra.mxu0 0.0
    %233 = vmatprep.subr.mxu0 0.0
    %234 = vmatpush1.msra.mxu0 0.0
    %235 = vmatprep.subr.mxu0 0.0
    %236 = vmatpush1.msra.mxu0 0.0
    %237 = vmatprep.mubr.f32.mxu0 0.0
    %238 = vmatmul.mubr.f32.gmra.mrb[0].mxu0 %v155
    %v239 = vpop.f32.mrb[0].mxu0
    %v240 = vadd.f32 0.0, %v239
    %v241 = vpop.f32.mrb[0].mxu0
    %242 = vdwg.mxu0
    %v243 = vadd.f32 %v156, %v240
    %244 = vst [vmem:[#allocation2] sm:$0xff] %v243
    // Predicated region
    $region30: #{mlp_forward.1} parent=1 // pred_check
      %p245 = pneg %p24
    $region31: #{mlp_forward.1} parent=1 // pred_check_branch
      %247 = sbr.rel (%p245) target = $region33
    $region32: #{mlp_forward.1} parent=1 // pred_region
      %v248 = vld [vmem:[#allocation2] sm:$0xff]
      %249 = vst [vmem:[#allocation3] sm:$0xff] %v248
    $region33: #{mlp_forward.1} parent=1 // pred_fallthru
      _
    // Predicated region
    $region34: #{mlp_forward.1} parent=1 // pred_check
      _
    $region35: #{mlp_forward.1} parent=1 // pred_check_branch
      %251 = sbr.rel (0) target = $region37
    $region36: #{mlp_forward.1} parent=1 // pred_region
      %s253 = ssub.s32 128, 128
      %254 = vsyncadd [#allocation4], %s253
      %s256 = sshll.u32 [#allocation3], 4
      %s257 = int_to_ptr.vmem [resolvable:$true] %s256
      %259 = dma.vmem_to_hbm [thread:$0]  %s257, 128, %s6, [#allocation4]
    $region37: #{mlp_forward.1} parent=1 // pred_fallthru
      _
    // Predicated region
    $region38: #{mlp_forward.1} parent=1 // pred_check
      _
    $region39: #{mlp_forward.1} parent=1 // pred_check_branch
      %261 = sbr.rel (0) target = $region41
    $region40: #{mlp_forward.1} parent=1 // pred_region
      %262 = dma.done [#allocation4], 128
    $region41: #{mlp_forward.1} parent=1 // pred_fallthru
      _
    %263 = vsyncpa [#allocation4], 1

</llo_original>
